<compile_context>
chip_gen: v5e
topology: v5e:2x2
jax: 0.10.0
libtpu: 0.0.40
codegen_flags: <defaults>
</compile_context>

<pallas_src>
import functools
import math

import jax
import jax.numpy as jnp
from jax.experimental import pallas as pl
from jax.experimental.pallas import tpu as pltpu

_LANE = 128     # last-dim (lane) alignment
_SUBLANE = 8    # second-to-last (sublane) alignment


def _round_up(x, m):
    return ((x + m - 1) // m) * m


def _vmem_limit_bytes():
    """Scoped-VMEM limit per chip generation, leaving DMA/scratch headroom."""
    try:
        kind = jax.devices()[0].device_kind.lower()
    except Exception:
        kind = ""
    if "v7" in kind:                      # v7x: 64 MiB physical per TensorCore
        return 48 * 1024 * 1024
    if "v5" in kind or "v6" in kind:      # 128 MiB physical
        return 100 * 1024 * 1024
    return 64 * 1024 * 1024               # unknown chip: stay conservative


def _pick_div_tile(dim, want):
    """Largest multiple of 128 <= `want` that divides `dim` (dim % 128 == 0)."""
    t = max(_LANE, (min(want, dim) // _LANE) * _LANE)
    while dim % t:
        t -= _LANE
    return t


# ----------------------------------------------------------------------------
# Kernels
# ----------------------------------------------------------------------------
def _fused_mlp_kernel(*refs, num_layers):
    """Fused MLP: refs = (x_ref, w0, b0, w1, b1, ..., o_ref).

    h = x; for i < L-1: h = gelu(h @ W_i + b_i); out = h @ W_{L-1} + b_{L-1}.
    Weights are bf16 (VMEM-resident), accumulation is f32, only the final
    result is stored to HBM.
    """
    x_ref = refs[0]
    o_ref = refs[-1]
    inv_sqrt2 = jnp.float32(1.0 / math.sqrt(2.0))
    h = x_ref[...]
    for i in range(num_layers):
        w = refs[1 + 2 * i][...]          # bf16, grid-invariant (resident)
        b = refs[2 + 2 * i][...]          # f32 (1, N)
        # bf16 operands feed the MXU at full rate; accumulate in f32.
        h = jnp.dot(h.astype(jnp.bfloat16), w,
                    preferred_element_type=jnp.float32) + b
        if i < num_layers - 1:
            # Exact (erf) GELU — matches torch.nn.functional.gelu default.
            # TODO(synk): tanh-approx GELU (EUP slot) if the model tolerates it.
            h = 0.5 * h * (1.0 + jax.lax.erf(h * inv_sqrt2))
    o_ref[...] = h.astype(o_ref.dtype)


def _linear_kernel(x_ref, w_ref, b_ref, o_ref, acc_ref, *, apply_gelu):
    """Fallback per-layer tiled matmul (+bias, +optional GELU) with K streaming."""
    @pl.when(pl.program_id(2) == 0)
    def _():
        acc_ref[...] = jnp.zeros_like(acc_ref)

    acc_ref[...] += jnp.dot(x_ref[...].astype(jnp.bfloat16), w_ref[...],
                            preferred_element_type=jnp.float32)

    @pl.when(pl.program_id(2) == pl.num_programs(2) - 1)
    def _():
        h = acc_ref[...] + b_ref[...]
        if apply_gelu:
            h = 0.5 * h * (1.0 + jax.lax.erf(h * jnp.float32(1.0 / math.sqrt(2.0))))
        o_ref[...] = h.astype(o_ref.dtype)


# ----------------------------------------------------------------------------
# Parameter init (padding done once here, not per forward call)
# ----------------------------------------------------------------------------
def init_mlp_params(key, input_dim, hidden_dim, output_dim, num_layers):
    """nn.Linear-style init U(-1/sqrt(in), 1/sqrt(in)).

    Returns (raw_params, padded_params):
      raw_params[i]    = (W (in,out) f32, b (out,) f32)
      padded_params[i] = (W_pad (in_p,out_p) bf16, b_pad (1,out_p) f32),
                         zero-padded to multiples of 128 on feature axes.
    """
    h = [hidden_dim] * (num_layers - 1)
    layer_dims = list(zip([input_dim] + h, h + [output_dim]))
    raw, padded = [], []
    for n_in, n_out in layer_dims:
        key, kw, kb = jax.random.split(key, 3)
        bound = 1.0 / math.sqrt(n_in)
        w = jax.random.uniform(kw, (n_in, n_out), jnp.float32, -bound, bound)
        b = jax.random.uniform(kb, (n_out,), jnp.float32, -bound, bound)
        raw.append((w, b))

        in_p = _round_up(n_in, _LANE)
        out_p = _round_up(n_out, _LANE)
        # Weights in bf16 (MXU-native; halves resident VMEM & weight HBM traffic).
        # Bias kept f32: negligible footprint, preserves f32 accumulation accuracy.
        w_pad = (jnp.zeros((in_p, out_p), jnp.float32)
                 .at[:n_in, :n_out].set(w).astype(jnp.bfloat16))
        b_pad = jnp.zeros((1, out_p), jnp.float32).at[0, :n_out].set(b)
        padded.append((w_pad, b_pad))
    return raw, padded


# ----------------------------------------------------------------------------
# Forward
# ----------------------------------------------------------------------------
def _fused_call(x_in, padded_params, tm, out_dtype, vmem_limit):
    M_pad, K_pad = x_in.shape
    N_last = padded_params[-1][0].shape[1]
    num_layers = len(padded_params)
    kernel = functools.partial(_fused_mlp_kernel, num_layers=num_layers)

    in_specs = [pl.BlockSpec((tm, K_pad), lambda i: (i, 0))]
    flat_wb = []
    for w_pad, b_pad in padded_params:
        # Grid-invariant blocks: whole weight/bias stays resident in VMEM.
        # Constant index_map => nothing to prefetch => single-buffer them.
        in_specs.append(pl.BlockSpec(w_pad.shape, lambda i: (0, 0),
                                     pipeline_mode=pl.Buffered(1)))
        in_specs.append(pl.BlockSpec(b_pad.shape, lambda i: (0, 0),
                                     pipeline_mode=pl.Buffered(1)))
        flat_wb.extend((w_pad, b_pad))

    return pl.pallas_call(
        kernel,
        out_shape=jax.ShapeDtypeStruct((M_pad, N_last), out_dtype),
        grid_spec=pltpu.PrefetchScalarGridSpec(
            num_scalar_prefetch=0,
            grid=(pl.cdiv(M_pad, tm),),           # no rounding M up to tile mult
            in_specs=in_specs,
            out_specs=pl.BlockSpec((tm, N_last), lambda i: (i, 0)),
        ),
        compiler_params=pltpu.CompilerParams(
            dimension_semantics=("parallel",),
            vmem_limit_bytes=vmem_limit,
        ),
    )(x_in, *flat_wb)


def _linear_layer(x, w_pad, b_pad, *, apply_gelu, out_dtype, tm, vmem_limit):
    M, K_pad = x.shape
    _, N_pad = w_pad.shape
    tm = max(_SUBLANE, min(tm, _round_up(M, _SUBLANE)))
    # K/N tiles must divide exactly (K garbage would corrupt the accumulator).
    tk = _pick_div_tile(K_pad, 512)
    tn = _pick_div_tile(N_pad, 512)
    kernel = functools.partial(_linear_kernel, apply_gelu=apply_gelu)
    return pl.pallas_call(
        kernel,
        out_shape=jax.ShapeDtypeStruct((M, N_pad), out_dtype),
        grid_spec=pltpu.PrefetchScalarGridSpec(
            num_scalar_prefetch=0,
            grid=(pl.cdiv(M, tm), N_pad // tn, K_pad // tk),
            in_specs=[pl.BlockSpec((tm, tk), lambda i, j, k: (i, k)),
                      pl.BlockSpec((tk, tn), lambda i, j, k: (k, j)),
                      pl.BlockSpec((1, tn), lambda i, j, k: (0, j))],
            out_specs=pl.BlockSpec((tm, tn), lambda i, j, k: (i, j)),
            scratch_shapes=[pltpu.VMEM((tm, tn), jnp.float32)],
        ),
        compiler_params=pltpu.CompilerParams(
            dimension_semantics=("parallel", "parallel", "arbitrary"),
            vmem_limit_bytes=vmem_limit,
        ),
    )(x, w_pad, b_pad)


def _per_layer_call(x_in, padded_params, tm, out_dtype, vmem_limit):
    h = x_in
    n = len(padded_params)
    for i, (w_pad, b_pad) in enumerate(padded_params):
        last = i == n - 1
        h = _linear_layer(h, w_pad, b_pad, apply_gelu=not last,
                          out_dtype=out_dtype if last else jnp.bfloat16,
                          tm=tm, vmem_limit=vmem_limit)
    return h


def mlp_forward(x, padded_params, output_dim, *, tm=512, force_per_layer=False):
    """Forward pass of the MLP stack.

    x: (..., input_dim).  Rows are flattened; feature dims use the pre-padded
    bf16 weights; the whole stack runs in one fused pallas_call when the
    resident weights fit the VMEM budget, else per-layer tiled matmuls.
    """
    lead = x.shape[:-1]
    xr = x.reshape(-1, x.shape[-1])
    M, K = xr.shape

    K_pad = padded_params[0][0].shape[0]
    N_last = padded_params[-1][0].shape[1]
    assert K <= K_pad

    M_pad = _round_up(M, _SUBLANE)

    # Skip the extra HBM pass when dims are already aligned.
    if M_pad == M and K_pad == K:
        x_in = xr
    else:
        x_in = jnp.zeros((M_pad, K_pad), xr.dtype).at[:M, :K].set(xr)

    # Row tile: large for roofline/step-overhead, but >=2 tiles when possible
    # (v7x has 2 TensorCores on the parallel axis), never larger than M_pad.
    tm = max(_SUBLANE, min(tm, M_pad))
    if M_pad >= 2 * _SUBLANE and pl.cdiv(M_pad, tm) < 2:
        tm = _round_up(pl.cdiv(M_pad, 2), _SUBLANE)

    vmem_limit = _vmem_limit_bytes()
    budget = int(vmem_limit * 0.8)

    wb_bytes = sum(w.size * w.dtype.itemsize + b.size * b.dtype.itemsize
                   for w, b in padded_params)
    n_max = max(w.shape[1] for w, _ in padded_params)

    def _fused_bytes(tm_):
        act = tm_ * K_pad * x_in.dtype.itemsize * 2        # input tile (x2 buf)
        act += tm_ * N_last * x.dtype.itemsize * 2         # output tile (x2 buf)
        act += tm_ * max(K_pad, n_max) * 4 * 2             # f32 h + bf16 staging
        return wb_bytes + act

    use_fused = not force_per_layer
    if use_fused:
        while _fused_bytes(tm) > budget and tm > _SUBLANE:
            tm = _round_up(tm // 2, _SUBLANE)
        if _fused_bytes(tm) > budget:
            use_fused = False      # resident weights alone exceed the budget

    if use_fused:
        out = _fused_call(x_in, padded_params, tm, x.dtype, vmem_limit)
    else:
        out = _per_layer_call(x_in, padded_params, tm, x.dtype, vmem_limit)

    if out.shape[0] != M or out.shape[1] != output_dim:
        out = out[:M, :output_dim]
    return out.reshape(*lead, output_dim)


# ----------------------------------------------------------------------------
# Self-test
# ----------------------------------------------------------------------------
if __name__ == "__main__":
    key = jax.random.PRNGKey(0)
    k_x, k_x2, k_p = jax.random.split(key, 3)

    # Small shapes consistent with the module.
    batch, seq = 2, 8
    input_dim, hidden_dim, output_dim, num_layers = 16, 32, 8, 3

    x = jax.random.normal(k_x, (batch, seq, input_dim), dtype=jnp.float32)
    raw_params, padded_params = init_mlp_params(
        k_p, input_dim, hidden_dim, output_dim, num_layers)

    # Reference uses the exact bf16-rounded weights the kernel sees, so the
    # tolerance only has to absorb bf16 activation rounding.
    ref_params = []
    for (w, _), (w_pad, b_pad) in zip(raw_params, padded_params):
        n_in, n_out = w.shape
        ref_params.append((w_pad[:n_in, :n_out].astype(jnp.float32),
                           b_pad[0, :n_out]))

    def ref_forward(xv, params):
        xr = xv.reshape(-1, xv.shape[-1])
        for i, (w, b) in enumerate(params):
            xr = xr @ w + b
            if i < len(params) - 1:
                xr = 0.5 * xr * (1.0 + jax.lax.erf(xr / jnp.sqrt(2.0)))
        return xr.reshape(*xv.shape[:-1], xr.shape[-1])

    # 1) Fused all-weights-resident path.
    out = mlp_forward(x, padded_params, output_dim)
    jax.block_until_ready(out)
    assert out.shape == (batch, seq, output_dim), out.shape
    ref = ref_forward(x, ref_params)
    assert jnp.allclose(out, ref, atol=2e-2, rtol=2e-2), float(
        jnp.max(jnp.abs(out - ref)))

    # 2) Awkward row count (exercises the cdiv grid / partial last row tile).
    x2 = jax.random.normal(k_x2, (3, 7, input_dim), dtype=jnp.float32)
    out2 = mlp_forward(x2, padded_params, output_dim)
    jax.block_until_ready(out2)
    assert out2.shape == (3, 7, output_dim), out2.shape
    ref2 = ref_forward(x2, ref_params)
    assert jnp.allclose(out2, ref2, atol=2e-2, rtol=2e-2), float(
        jnp.max(jnp.abs(out2 - ref2)))

    # 3) Per-layer fallback path (used when resident weights exceed VMEM budget).
    out3 = mlp_forward(x, padded_params, output_dim, force_per_layer=True)
    jax.block_until_ready(out3)
    assert jnp.allclose(out3, ref, atol=2e-2, rtol=2e-2), float(
        jnp.max(jnp.abs(out3 - ref)))

    print("KERNEL_OK")
</pallas_src>

<mosaic_0001>
module attributes {stable_mosaic.version = 11 : i64} {
  func.func @_fused_mlp_kernel(%arg0: i32, %arg1: memref<8x128xf32, #tpu.memory_space<vmem>>, %arg2: memref<128x128xbf16, #tpu.memory_space<vmem>>, %arg3: memref<1x128xf32, #tpu.memory_space<vmem>>, %arg4: memref<128x128xbf16, #tpu.memory_space<vmem>>, %arg5: memref<1x128xf32, #tpu.memory_space<vmem>>, %arg6: memref<128x128xbf16, #tpu.memory_space<vmem>>, %arg7: memref<1x128xf32, #tpu.memory_space<vmem>>, %arg8: memref<8x128xf32, #tpu.memory_space<vmem>>) attributes {dimension_semantics = [#tpu.dimension_semantics<parallel>], iteration_bounds = array<i64: 2>, scalar_prefetch = 0 : i64, scratch_operands = 0 : i64, tpu.core_type = #tpu.core_type<tc>, window_params = [{transform_indices = @transform_0, window_bounds = array<i64: 8, 128>}, {pipeline_mode = #tpu.pipeline_mode<synchronous>, transform_indices = @transform_1, window_bounds = array<i64: 128, 128>}, {pipeline_mode = #tpu.pipeline_mode<synchronous>, transform_indices = @transform_2, window_bounds = array<i64: 1, 128>}, {pipeline_mode = #tpu.pipeline_mode<synchronous>, transform_indices = @transform_3, window_bounds = array<i64: 128, 128>}, {pipeline_mode = #tpu.pipeline_mode<synchronous>, transform_indices = @transform_4, window_bounds = array<i64: 1, 128>}, {pipeline_mode = #tpu.pipeline_mode<synchronous>, transform_indices = @transform_5, window_bounds = array<i64: 128, 128>}, {pipeline_mode = #tpu.pipeline_mode<synchronous>, transform_indices = @transform_6, window_bounds = array<i64: 1, 128>}, {transform_indices = @transform_7, window_bounds = array<i64: 8, 128>}]} {
    %c0 = arith.constant 0 : index
    %c0_0 = arith.constant 0 : index
    %0 = vector.load %arg1[%c0, %c0_0] : memref<8x128xf32, #tpu.memory_space<vmem>>, vector<8x128xf32>
    %c0_1 = arith.constant 0 : index
    %c0_2 = arith.constant 0 : index
    %1 = vector.load %arg2[%c0_1, %c0_2] : memref<128x128xbf16, #tpu.memory_space<vmem>>, vector<128x128xbf16>
    %c0_3 = arith.constant 0 : index
    %c0_4 = arith.constant 0 : index
    %2 = vector.load %arg3[%c0_3, %c0_4] : memref<1x128xf32, #tpu.memory_space<vmem>>, vector<1x128xf32>
    %3 = arith.truncf %0 : vector<8x128xf32> to vector<8x128xbf16>
    %cst = arith.constant dense<0.000000e+00> : vector<8x128xf32>
    %4 = tpu.matmul %3, %1, %cst {dimension_numbers = #tpu.dot_dimension_numbers<[1], [0], [0], [1], [0, 0, 1, 1], [], []>} : vector<8x128xbf16>, vector<128x128xbf16>, vector<8x128xf32> -> vector<8x128xf32>
    %5 = vector.broadcast %2 : vector<1x128xf32> to vector<8x128xf32>
    %6 = arith.addf %4, %5 : vector<8x128xf32>
    %cst_5 = arith.constant 5.000000e-01 : f32
    %7 = vector.broadcast %cst_5 : f32 to vector<8x128xf32>
    %8 = arith.mulf %7, %6 : vector<8x128xf32>
    %cst_6 = arith.constant 0.707106769 : f32
    %9 = vector.broadcast %cst_6 : f32 to vector<8x128xf32>
    %10 = arith.mulf %6, %9 : vector<8x128xf32>
    %11 = math.erf %10 : vector<8x128xf32>
    %cst_7 = arith.constant 1.000000e+00 : f32
    %12 = vector.broadcast %cst_7 : f32 to vector<8x128xf32>
    %13 = arith.addf %12, %11 : vector<8x128xf32>
    %14 = arith.mulf %8, %13 : vector<8x128xf32>
    %c0_8 = arith.constant 0 : index
    %c0_9 = arith.constant 0 : index
    %15 = vector.load %arg4[%c0_8, %c0_9] : memref<128x128xbf16, #tpu.memory_space<vmem>>, vector<128x128xbf16>
    %c0_10 = arith.constant 0 : index
    %c0_11 = arith.constant 0 : index
    %16 = vector.load %arg5[%c0_10, %c0_11] : memref<1x128xf32, #tpu.memory_space<vmem>>, vector<1x128xf32>
    %17 = arith.truncf %14 : vector<8x128xf32> to vector<8x128xbf16>
    %cst_12 = arith.constant dense<0.000000e+00> : vector<8x128xf32>
    %18 = tpu.matmul %17, %15, %cst_12 {dimension_numbers = #tpu.dot_dimension_numbers<[1], [0], [0], [1], [0, 0, 1, 1], [], []>} : vector<8x128xbf16>, vector<128x128xbf16>, vector<8x128xf32> -> vector<8x128xf32>
    %19 = vector.broadcast %16 : vector<1x128xf32> to vector<8x128xf32>
    %20 = arith.addf %18, %19 : vector<8x128xf32>
    %cst_13 = arith.constant 5.000000e-01 : f32
    %21 = vector.broadcast %cst_13 : f32 to vector<8x128xf32>
    %22 = arith.mulf %21, %20 : vector<8x128xf32>
    %cst_14 = arith.constant 0.707106769 : f32
    %23 = vector.broadcast %cst_14 : f32 to vector<8x128xf32>
    %24 = arith.mulf %20, %23 : vector<8x128xf32>
    %25 = math.erf %24 : vector<8x128xf32>
    %cst_15 = arith.constant 1.000000e+00 : f32
    %26 = vector.broadcast %cst_15 : f32 to vector<8x128xf32>
    %27 = arith.addf %26, %25 : vector<8x128xf32>
    %28 = arith.mulf %22, %27 : vector<8x128xf32>
    %c0_16 = arith.constant 0 : index
    %c0_17 = arith.constant 0 : index
    %29 = vector.load %arg6[%c0_16, %c0_17] : memref<128x128xbf16, #tpu.memory_space<vmem>>, vector<128x128xbf16>
    %c0_18 = arith.constant 0 : index
    %c0_19 = arith.constant 0 : index
    %30 = vector.load %arg7[%c0_18, %c0_19] : memref<1x128xf32, #tpu.memory_space<vmem>>, vector<1x128xf32>
    %31 = arith.truncf %28 : vector<8x128xf32> to vector<8x128xbf16>
    %cst_20 = arith.constant dense<0.000000e+00> : vector<8x128xf32>
    %32 = tpu.matmul %31, %29, %cst_20 {dimension_numbers = #tpu.dot_dimension_numbers<[1], [0], [0], [1], [0, 0, 1, 1], [], []>} : vector<8x128xbf16>, vector<128x128xbf16>, vector<8x128xf32> -> vector<8x128xf32>
    %33 = vector.broadcast %30 : vector<1x128xf32> to vector<8x128xf32>
    %34 = arith.addf %32, %33 : vector<8x128xf32>
    %c0_21 = arith.constant 0 : index
    %c0_22 = arith.constant 0 : index
    %35 = vector.load %arg8[%c0_21, %c0_22] : memref<8x128xf32, #tpu.memory_space<vmem>>, vector<8x128xf32>
    tpu.vector_store %arg8[%c0_21, %c0_22], %34 {strides = array<i32>} : memref<8x128xf32, #tpu.memory_space<vmem>>, vector<8x128xf32>,
    return
  }
  func.func @transform_0(%arg0: i32) -> (i32, i32) {
    %c0_i32 = arith.constant 0 : i32
    %c0_i32_0 = arith.constant 0 : i32
    return %arg0, %c0_i32 : i32, i32
  }
  func.func @transform_1(%arg0: i32) -> (i32, i32) {
    %c0_i32 = arith.constant 0 : i32
    %c0_i32_0 = arith.constant 0 : i32
    %c0_i32_1 = arith.constant 0 : i32
    return %c0_i32, %c0_i32_0 : i32, i32
  }
  func.func @transform_2(%arg0: i32) -> (i32, i32) {
    %c0_i32 = arith.constant 0 : i32
    %c0_i32_0 = arith.constant 0 : i32
    %c0_i32_1 = arith.constant 0 : i32
    return %c0_i32, %c0_i32_0 : i32, i32
  }
  func.func @transform_3(%arg0: i32) -> (i32, i32) {
    %c0_i32 = arith.constant 0 : i32
    %c0_i32_0 = arith.constant 0 : i32
    %c0_i32_1 = arith.constant 0 : i32
    return %c0_i32, %c0_i32_0 : i32, i32
  }
  func.func @transform_4(%arg0: i32) -> (i32, i32) {
    %c0_i32 = arith.constant 0 : i32
    %c0_i32_0 = arith.constant 0 : i32
    %c0_i32_1 = arith.constant 0 : i32
    return %c0_i32, %c0_i32_0 : i32, i32
  }
  func.func @transform_5(%arg0: i32) -> (i32, i32) {
    %c0_i32 = arith.constant 0 : i32
    %c0_i32_0 = arith.constant 0 : i32
    %c0_i32_1 = arith.constant 0 : i32
    return %c0_i32, %c0_i32_0 : i32, i32
  }
  func.func @transform_6(%arg0: i32) -> (i32, i32) {
    %c0_i32 = arith.constant 0 : i32
    %c0_i32_0 = arith.constant 0 : i32
    %c0_i32_1 = arith.constant 0 : i32
    return %c0_i32, %c0_i32_0 : i32, i32
  }
  func.func @transform_7(%arg0: i32) -> (i32, i32) {
    %c0_i32 = arith.constant 0 : i32
    %c0_i32_0 = arith.constant 0 : i32
    return %arg0, %c0_i32 : i32, i32
  }
}

</mosaic_0001>

<llo_original>
// kernel: tpu_custom_call.1
$region0: #{tpu_custom_call.1}
  #allocation0 [shape = 'u32[]', space=smem, size = 0x4, offset = 0x4, fixed_abs, tag = 'smem constant byte address 0x4 - core index']
  #allocation1 [shape = 'u32[72,128]{1,0:T(1,128)}', space=vmem, size = 0x9000, scoped, tag = 'internal scratch']
  %s0 = inlined_call_operand.hbm [shape: f32[16,128], index: 0, kind: input, shape index: {}]
  %s1 = inlined_call_operand.hbm [shape: bf16[128,128], index: 1, kind: input, shape index: {}]
  %s2 = inlined_call_operand.vmem [shape: f32[1,128], index: 2, kind: input, shape index: {}]
  %s3 = inlined_call_operand.hbm [shape: bf16[128,128], index: 3, kind: input, shape index: {}]
  %s4 = inlined_call_operand.vmem [shape: f32[1,128], index: 4, kind: input, shape index: {}]
  %s5 = inlined_call_operand.hbm [shape: bf16[128,128], index: 5, kind: input, shape index: {}]
  %s6 = inlined_call_operand.vmem [shape: f32[1,128], index: 6, kind: input, shape index: {}]
  %s7 = inlined_call_operand.hbm [shape: f32[16,128], index: 7, kind: output, shape index: {}]
  %s8 = sld [smem:[#allocation0]]
  $region77: #{tpu_custom_call.1} parent=0
    _
  %s10 = ssub.s32 1, %s8
  %s11 = scalar_select 0, %s10, %s8
  $region1: #{tpu_custom_call.1} parent=0
    #allocation2 [shape = 'u8[8192]{0}', space=vmem, size = 0x2000, scoped, tag = 'input window, operand 0']
    #allocation3 [shape = 's32[2]{0}', space=sflag, size = 0x8, scoped, tag = 'scoped memory for tpu_custom_call.1']
    #allocation4 [shape = 's32[2]{0}', space=sflag, size = 0x8, scoped, tag = 'scoped memory for tpu_custom_call.1']
    #allocation5 [shape = 'u8[32768]{0}', space=vmem, size = 0x8000, scoped, tag = 'input window, operand 1, single buffered']
    #allocation6 [shape = 's32[1]{0}', space=sflag, size = 0x4, scoped, tag = 'scoped memory for tpu_custom_call.1']
    #allocation7 [shape = 'u8[32768]{0}', space=vmem, size = 0x8000, scoped, tag = 'input window, operand 3, single buffered']
    #allocation8 [shape = 'u8[32768]{0}', space=vmem, size = 0x8000, scoped, tag = 'input window, operand 5, single buffered']
    #allocation9 [shape = 's32[1]{0}', space=sflag, size = 0x4, scoped, tag = 'scoped memory for tpu_custom_call.1']
    #allocation10 [shape = 'u8[8192]{0}', space=vmem, size = 0x2000, scoped, tag = 'output window, operand 0']
    %12 = vsyncpa [#allocation3], 0
    %s13 = scalar_lea.sflag [#allocation3], 1
    %14 = vsyncpa %s13, 0
    %15 = vsyncpa [#allocation6], 0
    %16 = vsyncpa [#allocation9], 0
    %17 = vsyncpa [#allocation4], 0
    %s18 = scalar_lea.sflag [#allocation4], 1
    %19 = vsyncpa %s18, 0
    loop: start=0, step=1, limit=4
    $region2: #{tpu_custom_call.1} parent=1 // loop_pre_header
      _
    $region3: #{tpu_custom_call.1} parent=1 // loop_header
      %s21 = sphi 0, %s25
      %p22 = scmp.ge.s32.totalorder %s21, 4
      %s31 = sphi 0, %s33
      %s34 = sphi 0, %s31
      %s35 = sphi 0, %s34
      %s51 = sphi 0, %s35
      %s55 = sphi 0, %s55
      %s57 = sphi 0, %s55
      %s58 = sphi 0, %s57
      %s72 = sphi 0, %s58
      %s76 = sphi 0, %s76
      %s78 = sphi 0, %s76
      %s79 = sphi 0, %s78
      %s93 = sphi 0, %s79
      %s97 = sphi 0, %s97
      %s99 = sphi 0, %s97
      %s100 = sphi 0, %s99
      %s114 = sphi 0, %s100
      %s118 = sphi 0, %s118
      %s120 = sphi 0, %s118
      %s121 = sphi 0, %s120
      %s135 = sphi 0, %s121
      %s139 = sphi 0, %s139
      %s141 = sphi 0, %s139
      %s142 = sphi 0, %s141
      %s156 = sphi 0, %s142
      %s160 = sphi 0, %s160
      %s162 = sphi 0, %s160
      %s163 = sphi 0, %s162
      %s177 = sphi 0, %s163
      %s183 = sphi 0, %s185
      %s186 = sphi 0, %s183
      %s187 = sphi 0, %s186
      %s203 = sphi 0, %s187
    $region4: #{tpu_custom_call.1} parent=1 // loop_header_branch
      %24 = sbr.rel (%p22) target = $region8
    $region5: #{tpu_custom_call.1} parent=1 // loop_body
      %s26 = ssub.s32 %s21, 1
      %s27 = ssub.s32 %s21, 2
      %s28 = sadd.s32 %s21, 1
      %s29 = ssub.s32 %s21, %s28
      %p30 = scmp.eq.s32.totalorder %s29, 0
      %s32 = sadd.s32 %s31, 1
      %s33 = scalar_select %p30, %s31, %s32
      %p36 = pneg %p30
      %p37 = scmp.eq.s32.totalorder %s21, 1
      %p38 = por %p36, %p37
      %p39 = scmp.ne.s32.totalorder %s31, %s34
      %p40 = scmp.eq.s32.totalorder %s21, 0
      %p41 = por %p39, %p40
      %p42 = scmp.ne.s32.totalorder %s31, %s34
      %p43 = scmp.eq.s32.totalorder %s26, 1
      %p44 = por %p42, %p43
      %p45 = scmp.ne.s32.totalorder %s34, %s35
      %p46 = scmp.eq.s32.totalorder %s26, 0
      %p47 = por %p45, %p46
      %p48 = scmp.ne.s32.totalorder %s34, %s35
      %p49 = scmp.eq.s32.totalorder %s27, 1
      %p50 = por %p48, %p49
      %p52 = scmp.ne.s32.totalorder %s35, %s51
      %p53 = scmp.eq.s32.totalorder %s27, 0
      %p54 = por %p52, %p53
      %s56 = sadd.s32 %s55, 1
      %p59 = scmp.eq.s32.totalorder %s21, 1
      %p60 = scmp.ne.s32.totalorder %s55, %s57
      %p61 = scmp.eq.s32.totalorder %s21, 0
      %p62 = por %p60, %p61
      %p63 = scmp.ne.s32.totalorder %s55, %s57
      %p64 = scmp.eq.s32.totalorder %s26, 1
      %p65 = por %p63, %p64
      %p66 = scmp.ne.s32.totalorder %s57, %s58
      %p67 = scmp.eq.s32.totalorder %s26, 0
      %p68 = por %p66, %p67
      %p69 = scmp.ne.s32.totalorder %s57, %s58
      %p70 = scmp.eq.s32.totalorder %s27, 1
      %p71 = por %p69, %p70
      %p73 = scmp.ne.s32.totalorder %s58, %s72
      %p74 = scmp.eq.s32.totalorder %s27, 0
      %p75 = por %p73, %p74
      %s77 = sadd.s32 %s76, 1
      %p80 = scmp.eq.s32.totalorder %s21, 1
      %p81 = scmp.ne.s32.totalorder %s76, %s78
      %p82 = scmp.eq.s32.totalorder %s21, 0
      %p83 = por %p81, %p82
      %p84 = scmp.ne.s32.totalorder %s76, %s78
      %p85 = scmp.eq.s32.totalorder %s26, 1
      %p86 = por %p84, %p85
      %p87 = scmp.ne.s32.totalorder %s78, %s79
      %p88 = scmp.eq.s32.totalorder %s26, 0
      %p89 = por %p87, %p88
      %p90 = scmp.ne.s32.totalorder %s78, %s79
      %p91 = scmp.eq.s32.totalorder %s27, 1
      %p92 = por %p90, %p91
      %p94 = scmp.ne.s32.totalorder %s79, %s93
      %p95 = scmp.eq.s32.totalorder %s27, 0
      %p96 = por %p94, %p95
      %s98 = sadd.s32 %s97, 1
      %p101 = scmp.eq.s32.totalorder %s21, 1
      %p102 = scmp.ne.s32.totalorder %s97, %s99
      %p103 = scmp.eq.s32.totalorder %s21, 0
      %p104 = por %p102, %p103
      %p105 = scmp.ne.s32.totalorder %s97, %s99
      %p106 = scmp.eq.s32.totalorder %s26, 1
      %p107 = por %p105, %p106
      %p108 = scmp.ne.s32.totalorder %s99, %s100
      %p109 = scmp.eq.s32.totalorder %s26, 0
      %p110 = por %p108, %p109
      %p111 = scmp.ne.s32.totalorder %s99, %s100
      %p112 = scmp.eq.s32.totalorder %s27, 1
      %p113 = por %p111, %p112
      %p115 = scmp.ne.s32.totalorder %s100, %s114
      %p116 = scmp.eq.s32.totalorder %s27, 0
      %p117 = por %p115, %p116
      %s119 = sadd.s32 %s118, 1
      %p122 = scmp.eq.s32.totalorder %s21, 1
      %p123 = scmp.ne.s32.totalorder %s118, %s120
      %p124 = scmp.eq.s32.totalorder %s21, 0
      %p125 = por %p123, %p124
      %p126 = scmp.ne.s32.totalorder %s118, %s120
      %p127 = scmp.eq.s32.totalorder %s26, 1
      %p128 = por %p126, %p127
      %p129 = scmp.ne.s32.totalorder %s120, %s121
      %p130 = scmp.eq.s32.totalorder %s26, 0
      %p131 = por %p129, %p130
      %p132 = scmp.ne.s32.totalorder %s120, %s121
      %p133 = scmp.eq.s32.totalorder %s27, 1
      %p134 = por %p132, %p133
      %p136 = scmp.ne.s32.totalorder %s121, %s135
      %p137 = scmp.eq.s32.totalorder %s27, 0
      %p138 = por %p136, %p137
      %s140 = sadd.s32 %s139, 1
      %p143 = scmp.eq.s32.totalorder %s21, 1
      %p144 = scmp.ne.s32.totalorder %s139, %s141
      %p145 = scmp.eq.s32.totalorder %s21, 0
      %p146 = por %p144, %p145
      %p147 = scmp.ne.s32.totalorder %s139, %s141
      %p148 = scmp.eq.s32.totalorder %s26, 1
      %p149 = por %p147, %p148
      %p150 = scmp.ne.s32.totalorder %s141, %s142
      %p151 = scmp.eq.s32.totalorder %s26, 0
      %p152 = por %p150, %p151
      %p153 = scmp.ne.s32.totalorder %s141, %s142
      %p154 = scmp.eq.s32.totalorder %s27, 1
      %p155 = por %p153, %p154
      %p157 = scmp.ne.s32.totalorder %s142, %s156
      %p158 = scmp.eq.s32.totalorder %s27, 0
      %p159 = por %p157, %p158
      %s161 = sadd.s32 %s160, 1
      %p164 = scmp.eq.s32.totalorder %s21, 1
      %p165 = scmp.ne.s32.totalorder %s160, %s162
      %p166 = scmp.eq.s32.totalorder %s21, 0
      %p167 = por %p165, %p166
      %p168 = scmp.ne.s32.totalorder %s160, %s162
      %p169 = scmp.eq.s32.totalorder %s26, 1
      %p170 = por %p168, %p169
      %p171 = scmp.ne.s32.totalorder %s162, %s163
      %p172 = scmp.eq.s32.totalorder %s26, 0
      %p173 = por %p171, %p172
      %p174 = scmp.ne.s32.totalorder %s162, %s163
      %p175 = scmp.eq.s32.totalorder %s27, 1
      %p176 = por %p174, %p175
      %p178 = scmp.ne.s32.totalorder %s163, %s177
      %p179 = scmp.eq.s32.totalorder %s27, 0
      %p180 = por %p178, %p179
      %s181 = ssub.s32 %s21, %s28
      %p182 = scmp.eq.s32.totalorder %s181, 0
      %s184 = sadd.s32 %s183, 1
      %s185 = scalar_select %p182, %s183, %s184
      %p188 = pneg %p182
      %p189 = scmp.eq.s32.totalorder %s21, 1
      %p190 = por %p188, %p189
      %p191 = scmp.ne.s32.totalorder %s183, %s186
      %p192 = scmp.eq.s32.totalorder %s21, 0
      %p193 = por %p191, %p192
      %p194 = scmp.ne.s32.totalorder %s183, %s186
      %p195 = scmp.eq.s32.totalorder %s26, 1
      %p196 = por %p194, %p195
      %p197 = scmp.ne.s32.totalorder %s186, %s187
      %p198 = scmp.eq.s32.totalorder %s26, 0
      %p199 = por %p197, %p198
      %p200 = scmp.ne.s32.totalorder %s186, %s187
      %p201 = scmp.eq.s32.totalorder %s27, 1
      %p202 = por %p200, %p201
      %p204 = scmp.ne.s32.totalorder %s187, %s203
      %p205 = scmp.eq.s32.totalorder %s27, 0
      %p206 = por %p204, %p205
      %p207 = scmp.le.s32.totalorder 1, %s21
      %p208 = scmp.lt.s32.totalorder %s21, 3
      %p209 = pnand %p207, %p208
      %p210 = pneg %p209
      // Predicated region
      $region9: #{tpu_custom_call.1} parent=5 // pred_check
        _
      $region10: #{tpu_custom_call.1} parent=5 // pred_check_branch
        %212 = sbr.rel (%p209) target = $region12
      $region11: #{tpu_custom_call.1} parent=5 // pred_region
        %s213 = ssub.s32 %s21, 1
        // Predicated region
        $region13: #{tpu_custom_call.1} parent=11 // pred_check
          %p214 = pneg %p68
        $region14: #{tpu_custom_call.1} parent=11 // pred_check_branch
          %216 = sbr.rel (%p214) target = $region16
        $region15: #{tpu_custom_call.1} parent=11 // pred_region
          %218 = vsyncadd [#allocation6], 0
          %s219 = sshll.u32 %s1, 4
          %s220 = int_to_ptr.hbm [resolvable:$true] %s219
          %s221 = sshll.u32 [#allocation5], 4
          %s222 = int_to_ptr.vmem [resolvable:$true] %s221
          %227 = dma.hbm_to_vmem [thread:$0]  %s220, 1024, %s222, [#allocation6], 64, 64, 4
        $region16: #{tpu_custom_call.1} parent=11 // pred_fallthru
          _
        // Predicated region
        $region17: #{tpu_custom_call.1} parent=11 // pred_check
          %p228 = pneg %p89
        $region18: #{tpu_custom_call.1} parent=11 // pred_check_branch
          %230 = sbr.rel (%p228) target = $region20
        $region19: #{tpu_custom_call.1} parent=11 // pred_region
          _
        $region20: #{tpu_custom_call.1} parent=11 // pred_fallthru
          _
        // Predicated region
        $region21: #{tpu_custom_call.1} parent=11 // pred_check
          %p231 = pneg %p110
        $region22: #{tpu_custom_call.1} parent=11 // pred_check_branch
          %233 = sbr.rel (%p231) target = $region24
        $region23: #{tpu_custom_call.1} parent=11 // pred_region
          %235 = vsyncadd [#allocation6], 0
          %s236 = sshll.u32 %s3, 4
          %s237 = int_to_ptr.hbm [resolvable:$true] %s236
          %s238 = sshll.u32 [#allocation7], 4
          %s239 = int_to_ptr.vmem [resolvable:$true] %s238
          %244 = dma.hbm_to_vmem [thread:$0]  %s237, 1024, %s239, [#allocation6], 64, 64, 4
        $region24: #{tpu_custom_call.1} parent=11 // pred_fallthru
          _
        // Predicated region
        $region25: #{tpu_custom_call.1} parent=11 // pred_check
          %p245 = pneg %p131
        $region26: #{tpu_custom_call.1} parent=11 // pred_check_branch
          %247 = sbr.rel (%p245) target = $region28
        $region27: #{tpu_custom_call.1} parent=11 // pred_region
          _
        $region28: #{tpu_custom_call.1} parent=11 // pred_fallthru
          _
        // Predicated region
        $region29: #{tpu_custom_call.1} parent=11 // pred_check
          %p248 = pneg %p152
        $region30: #{tpu_custom_call.1} parent=11 // pred_check_branch
          %250 = sbr.rel (%p248) target = $region32
        $region31: #{tpu_custom_call.1} parent=11 // pred_region
          %252 = vsyncadd [#allocation9], 0
          %s253 = sshll.u32 %s5, 4
          %s254 = int_to_ptr.hbm [resolvable:$true] %s253
          %s255 = sshll.u32 [#allocation8], 4
          %s256 = int_to_ptr.vmem [resolvable:$true] %s255
          %261 = dma.hbm_to_vmem [thread:$0]  %s254, 1024, %s256, [#allocation9], 64, 64, 4
        $region32: #{tpu_custom_call.1} parent=11 // pred_fallthru
          _
        // Predicated region
        $region33: #{tpu_custom_call.1} parent=11 // pred_check
          %p262 = pneg %p173
        $region34: #{tpu_custom_call.1} parent=11 // pred_check_branch
          %264 = sbr.rel (%p262) target = $region36
        $region35: #{tpu_custom_call.1} parent=11 // pred_region
          _
        $region36: #{tpu_custom_call.1} parent=11 // pred_fallthru
          _
      $region12: #{tpu_custom_call.1} parent=5 // pred_fallthru
        _
      %p265 = scmp.lt.s32.totalorder %s21, 2
      // Predicated region
      $region37: #{tpu_custom_call.1} parent=5 // pred_check
        %p266 = pneg %p265
      $region38: #{tpu_custom_call.1} parent=5 // pred_check_branch
        %268 = sbr.rel (%p266) target = $region40
      $region39: #{tpu_custom_call.1} parent=5 // pred_region
        // Predicated region
        $region41: #{tpu_custom_call.1} parent=39 // pred_check
          %p269 = pneg %p41
        $region42: #{tpu_custom_call.1} parent=39 // pred_check_branch
          %271 = sbr.rel (%p269) target = $region44
        $region43: #{tpu_custom_call.1} parent=39 // pred_region
          %s272 = sand.u32 %s31, 1
          %s273 = scalar_lea.sflag [#allocation3], %s272
          %s274 = sand.u32 %s31, 1
          %s275 = smul.addr %s274, 8
          %s276 = scalar_lea.vmem [#allocation2], %s275
          %278 = vsyncadd %s273, 0
          %s279 = smul.addr %s21, 8
          %s280 = scalar_lea.hbm %s0, %s279
          %s282 = sshll.u32 %s280, 4
          %s283 = int_to_ptr.hbm [resolvable:$true] %s282
          %s284 = sshll.u32 %s276, 4
          %s285 = int_to_ptr.vmem [resolvable:$true] %s284
          %287 = dma.hbm_to_vmem [thread:$0]  %s283, 128, %s285, %s273
        $region44: #{tpu_custom_call.1} parent=39 // pred_fallthru
          _
      $region40: #{tpu_custom_call.1} parent=5 // pred_fallthru
        _
      %p288 = scmp.le.s32.totalorder 1, %s21
      %p289 = scmp.lt.s32.totalorder %s21, 3
      %p290 = pnand %p288, %p289
      %p291 = pneg %p290
      // Predicated region
      $region45: #{tpu_custom_call.1} parent=5 // pred_check
        _
      $region46: #{tpu_custom_call.1} parent=5 // pred_check_branch
        %293 = sbr.rel (%p290) target = $region48
      $region47: #{tpu_custom_call.1} parent=5 // pred_region
        %s294 = ssub.s32 %s21, 1
        %s295 = sand.u32 %s34, 1
        %s296 = scalar_lea.sflag [#allocation3], %s295
        %s297 = sand.u32 %s34, 1
        %s298 = smul.addr %s297, 8
        %s299 = scalar_lea.vmem [#allocation2], %s298
        // Predicated region
        $region49: #{tpu_custom_call.1} parent=47 // pred_check
          %p300 = pneg %p47
        $region50: #{tpu_custom_call.1} parent=47 // pred_check_branch
          %302 = sbr.rel (%p300) target = $region52
        $region51: #{tpu_custom_call.1} parent=47 // pred_region
          %304 = dma.done %s296, 128
        $region52: #{tpu_custom_call.1} parent=47 // pred_fallthru
          _
        // Predicated region
        $region53: #{tpu_custom_call.1} parent=47 // pred_check
          %p305 = pneg %p68
        $region54: #{tpu_custom_call.1} parent=47 // pred_check_branch
          %307 = sbr.rel (%p305) target = $region56
        $region55: #{tpu_custom_call.1} parent=47 // pred_region
          %309 = dma.done [#allocation6], 1024
        $region56: #{tpu_custom_call.1} parent=47 // pred_fallthru
          _
        // Predicated region
        $region57: #{tpu_custom_call.1} parent=47 // pred_check
          %p310 = pneg %p110
        $region58: #{tpu_custom_call.1} parent=47 // pred_check_branch
          %312 = sbr.rel (%p310) target = $region60
        $region59: #{tpu_custom_call.1} parent=47 // pred_region
          %314 = dma.done [#allocation6], 1024
        $region60: #{tpu_custom_call.1} parent=47 // pred_fallthru
          _
        // Predicated region
        $region61: #{tpu_custom_call.1} parent=47 // pred_check
          %p315 = pneg %p152
        $region62: #{tpu_custom_call.1} parent=47 // pred_check_branch
          %317 = sbr.rel (%p315) target = $region64
        $region63: #{tpu_custom_call.1} parent=47 // pred_region
          %319 = dma.done [#allocation9], 1024
        $region64: #{tpu_custom_call.1} parent=47 // pred_fallthru
          _
        %s320 = sand.u32 %s34, 1
        %s321 = scalar_lea.sflag [#allocation3], %s320
        %s322 = sand.u32 %s34, 1
        %s323 = smul.addr %s322, 8
        %s324 = scalar_lea.vmem [#allocation2], %s323
        %p325 = pneg %p47
        %p326 = pneg %p44
        %p327 = pneg %p68
        %p328 = pneg %p65
        %p329 = pneg %p89
        %p330 = pneg %p86
        %p331 = pneg %p110
        %p332 = pneg %p107
        %p333 = pneg %p131
        %p334 = pneg %p128
        %p335 = pneg %p152
        %p336 = pneg %p149
        %p337 = pneg %p173
        %p338 = pneg %p170
        %p339 = pneg %p199
        %p340 = pneg %p196
        %s341 = sand.u32 %s186, 1
        %s342 = scalar_lea.sflag [#allocation4], %s341
        %s343 = sand.u32 %s186, 1
        %s344 = smul.addr %s343, 8
        %s345 = scalar_lea.vmem [#allocation10], %s344
        %v346 = vld [vmem:[%s299] sm:$0xff]
        %v347 = vld [vmem:[#allocation5] sm:$0xf]
        %v348 = vld [vmem:[#allocation5 + $0x4] sm:$0xf]
        %v349 = vld [vmem:[#allocation5 + $0x8] sm:$0xf]
        %v350 = vld [vmem:[#allocation5 + $0xc] sm:$0xf]
        %v351 = vld [vmem:[#allocation5 + $0x10] sm:$0xf]
        %v352 = vld [vmem:[#allocation5 + $0x14] sm:$0xf]
        %v353 = vld [vmem:[#allocation5 + $0x18] sm:$0xf]
        %v354 = vld [vmem:[#allocation5 + $0x1c] sm:$0xf]
        %v355 = vld [vmem:[#allocation5 + $0x20] sm:$0xf]
        %v356 = vld [vmem:[#allocation5 + $0x24] sm:$0xf]
        %v357 = vld [vmem:[#allocation5 + $0x28] sm:$0xf]
        %v358 = vld [vmem:[#allocation5 + $0x2c] sm:$0xf]
        %v359 = vld [vmem:[#allocation5 + $0x30] sm:$0xf]
        %v360 = vld [vmem:[#allocation5 + $0x34] sm:$0xf]
        %v361 = vld [vmem:[#allocation5 + $0x38] sm:$0xf]
        %v362 = vld [vmem:[#allocation5 + $0x3c] sm:$0xf]
        %v363 = vld [vmem:[%s2] sm:$0x1]
        %v364 = vpack.c.bf16 %v346, %v346
        %v366 = vperm.slane %v363, 0
        %v384 = vunpack.c.l.b16 %v347
        %v385 = vunpack.c.l.b16 %v348
        %v386 = vunpack.c.l.b16 %v349
        %v387 = vunpack.c.l.b16 %v350
        %v388 = vunpack.c.l.b16 %v351
        %v389 = vunpack.c.l.b16 %v352
        %v390 = vunpack.c.l.b16 %v353
        %v391 = vunpack.c.l.b16 %v354
        %v392 = vunpack.c.l.b16 %v355
        %v393 = vunpack.c.l.b16 %v356
        %v394 = vunpack.c.l.b16 %v357
        %v395 = vunpack.c.l.b16 %v358
        %v396 = vunpack.c.l.b16 %v359
        %v397 = vunpack.c.l.b16 %v360
        %v398 = vunpack.c.l.b16 %v361
        %v399 = vunpack.c.l.b16 %v362
        %v400 = vpack.c.b16 %v385, %v384
        %v401 = vpack.c.b16 %v387, %v386
        %v402 = vpack.c.b16 %v389, %v388
        %v403 = vpack.c.b16 %v391, %v390
        %v404 = vpack.c.b16 %v393, %v392
        %v405 = vpack.c.b16 %v395, %v394
        %v406 = vpack.c.b16 %v397, %v396
        %v407 = vpack.c.b16 %v399, %v398
        %416 = vmatpush.bf16.msra.mxu0 %v407
        %417 = vmatpush.bf16.msra.mxu0 %v406
        %418 = vmatpush.bf16.msra.mxu0 %v405
        %419 = vmatpush.bf16.msra.mxu0 %v404
        %420 = vmatpush.bf16.msra.mxu0 %v403
        %421 = vmatpush.bf16.msra.mxu0 %v402
        %422 = vmatpush.bf16.msra.mxu0 %v401
        %423 = vmatpush.bf16.msra.mxu0 %v400
        %424 = vmatmul.bf16.gmra.mxu0 %v364
        %v425 = vpop.f32.mrf.mxu0
        %v426 = vadd.f32 %v366, %v425
        %v427 = vpop.f32.mrf.mxu0
        %428 = vdwg.mxu0
        %v429 = vmul.f32 %v426, 0.5
        %v430 = vmul.f32 %v426, 0.70710677
        %v431 = vmul.f32 %v430, %v430
        %v432 = vmin.f32 16.0, %v431
        %v433 = vmul.f32 %v432, 2.1237322e-06
        %v434 = vadd.f32 %v433, 0.00028619796
        %v435 = vmul.f32 %v432, %v434
        %v436 = vadd.f32 %v435, 0.0036580483
        %v437 = vmul.f32 %v432, %v436
        %v438 = vadd.f32 %v437, 0.05243302
        %v439 = vmul.f32 %v432, %v438
        %v440 = vadd.f32 %v439, 0.18741608
        %v441 = vmul.f32 %v432, %v440
        %v442 = vadd.f32 %v441, 1.1283791
        %v443 = vmul.f32 %v430, %v442
        %v444 = vmul.f32 %v432, 3.8918573e-05
        %v445 = vadd.f32 %v444, 0.001143296
        %v446 = vmul.f32 %v432, %v445
        %v447 = vadd.f32 %v446, 0.014752088
        %v448 = vmul.f32 %v432, %v447
        %v449 = vadd.f32 %v448, 0.112945676
        %v450 = vmul.f32 %v432, %v449
        %v451 = vadd.f32 %v450, 0.4994258
        %v452 = vmul.f32 %v432, %v451
        %v453 = vadd.f32 %v452, 1.0
        %v454 = vrcp.pop %v453
        %v455 = vmul.f32 %v453, %v454
        %v456 = vsub.f32 1.0, %v455
        %v457 = vmul.f32 %v454, %v456
        %v458 = vadd.f32 %v454, %v457
        %vm459 = vweird.f32 %v453
        %vm460 = vweird.f32 %v454
        %vm461 = vmor %vm459, %vm460
        %v462 = vsel %vm461, %v454, %v458
        %v463 = vand.u32 2147483647, %v453
        %vm464 = vcmp.eq.f32.partialorder %v463, 8.507059e+37
        %v465 = vand.u32 %v453, 2147483648
        %v466 = vor.u32 1.1754944e-38, %v465
        %v467 = vsel %vm464, %v466, %v462
        %v468 = vmul.f32 %v443, %v467
        %v469 = vmin.f32 %v468, 1.0
        %v470 = vmax.f32 %v469, -1.0
        %v471 = vadd.f32 %v470, 1.0
        %v472 = vmul.f32 %v429, %v471
        %v473 = vld [vmem:[#allocation7] sm:$0xf]
        %v474 = vld [vmem:[#allocation7 + $0x4] sm:$0xf]
        %v475 = vld [vmem:[#allocation7 + $0x8] sm:$0xf]
        %v476 = vld [vmem:[#allocation7 + $0xc] sm:$0xf]
        %v477 = vld [vmem:[#allocation7 + $0x10] sm:$0xf]
        %v478 = vld [vmem:[#allocation7 + $0x14] sm:$0xf]
        %v479 = vld [vmem:[#allocation7 + $0x18] sm:$0xf]
        %v480 = vld [vmem:[#allocation7 + $0x1c] sm:$0xf]
        %v481 = vld [vmem:[#allocation7 + $0x20] sm:$0xf]
        %v482 = vld [vmem:[#allocation7 + $0x24] sm:$0xf]
        %v483 = vld [vmem:[#allocation7 + $0x28] sm:$0xf]
        %v484 = vld [vmem:[#allocation7 + $0x2c] sm:$0xf]
        %v485 = vld [vmem:[#allocation7 + $0x30] sm:$0xf]
        %v486 = vld [vmem:[#allocation7 + $0x34] sm:$0xf]
        %v487 = vld [vmem:[#allocation7 + $0x38] sm:$0xf]
        %v488 = vld [vmem:[#allocation7 + $0x3c] sm:$0xf]
        %v489 = vld [vmem:[%s4] sm:$0x1]
        %v490 = vpack.c.bf16 %v472, %v472
        %v492 = vperm.slane %v489, 0
        %v510 = vunpack.c.l.b16 %v473
        %v511 = vunpack.c.l.b16 %v474
        %v512 = vunpack.c.l.b16 %v475
        %v513 = vunpack.c.l.b16 %v476
        %v514 = vunpack.c.l.b16 %v477
        %v515 = vunpack.c.l.b16 %v478
        %v516 = vunpack.c.l.b16 %v479
        %v517 = vunpack.c.l.b16 %v480
        %v518 = vunpack.c.l.b16 %v481
        %v519 = vunpack.c.l.b16 %v482
        %v520 = vunpack.c.l.b16 %v483
        %v521 = vunpack.c.l.b16 %v484
        %v522 = vunpack.c.l.b16 %v485
        %v523 = vunpack.c.l.b16 %v486
        %v524 = vunpack.c.l.b16 %v487
        %v525 = vunpack.c.l.b16 %v488
        %v526 = vpack.c.b16 %v511, %v510
        %v527 = vpack.c.b16 %v513, %v512
        %v528 = vpack.c.b16 %v515, %v514
        %v529 = vpack.c.b16 %v517, %v516
        %v530 = vpack.c.b16 %v519, %v518
        %v531 = vpack.c.b16 %v521, %v520
        %v532 = vpack.c.b16 %v523, %v522
        %v533 = vpack.c.b16 %v525, %v524
        %542 = vmatpush.bf16.msra.mxu0 %v533
        %543 = vmatpush.bf16.msra.mxu0 %v532
        %544 = vmatpush.bf16.msra.mxu0 %v531
        %545 = vmatpush.bf16.msra.mxu0 %v530
        %546 = vmatpush.bf16.msra.mxu0 %v529
        %547 = vmatpush.bf16.msra.mxu0 %v528
        %548 = vmatpush.bf16.msra.mxu0 %v527
        %549 = vmatpush.bf16.msra.mxu0 %v526
        %550 = vmatmul.bf16.gmra.mxu0 %v490
        %v551 = vpop.f32.mrf.mxu0
        %v552 = vadd.f32 %v492, %v551
        %v553 = vpop.f32.mrf.mxu0
        %554 = vdwg.mxu0
        %v555 = vmul.f32 %v552, 0.5
        %v556 = vmul.f32 %v552, 0.70710677
        %v557 = vmul.f32 %v556, %v556
        %v558 = vmin.f32 16.0, %v557
        %v559 = vmul.f32 %v558, 2.1237322e-06
        %v560 = vadd.f32 %v559, 0.00028619796
        %v561 = vmul.f32 %v558, %v560
        %v562 = vadd.f32 %v561, 0.0036580483
        %v563 = vmul.f32 %v558, %v562
        %v564 = vadd.f32 %v563, 0.05243302
        %v565 = vmul.f32 %v558, %v564
        %v566 = vadd.f32 %v565, 0.18741608
        %v567 = vmul.f32 %v558, %v566
        %v568 = vadd.f32 %v567, 1.1283791
        %v569 = vmul.f32 %v556, %v568
        %v570 = vmul.f32 %v558, 3.8918573e-05
        %v571 = vadd.f32 %v570, 0.001143296
        %v572 = vmul.f32 %v558, %v571
        %v573 = vadd.f32 %v572, 0.014752088
        %v574 = vmul.f32 %v558, %v573
        %v575 = vadd.f32 %v574, 0.112945676
        %v576 = vmul.f32 %v558, %v575
        %v577 = vadd.f32 %v576, 0.4994258
        %v578 = vmul.f32 %v558, %v577
        %v579 = vadd.f32 %v578, 1.0
        %v580 = vrcp.pop %v579
        %v581 = vmul.f32 %v579, %v580
        %v582 = vsub.f32 1.0, %v581
        %v583 = vmul.f32 %v580, %v582
        %v584 = vadd.f32 %v580, %v583
        %vm585 = vweird.f32 %v579
        %vm586 = vweird.f32 %v580
        %vm587 = vmor %vm585, %vm586
        %v588 = vsel %vm587, %v580, %v584
        %v589 = vand.u32 2147483647, %v579
        %vm590 = vcmp.eq.f32.partialorder %v589, 8.507059e+37
        %v591 = vand.u32 %v579, 2147483648
        %v592 = vor.u32 1.1754944e-38, %v591
        %v593 = vsel %vm590, %v592, %v588
        %v594 = vmul.f32 %v569, %v593
        %v595 = vmin.f32 %v594, 1.0
        %v596 = vmax.f32 %v595, -1.0
        %v597 = vadd.f32 %v596, 1.0
        %v598 = vmul.f32 %v555, %v597
        %v599 = vld [vmem:[#allocation8] sm:$0xf]
        %v600 = vld [vmem:[#allocation8 + $0x4] sm:$0xf]
        %v601 = vld [vmem:[#allocation8 + $0x8] sm:$0xf]
        %v602 = vld [vmem:[#allocation8 + $0xc] sm:$0xf]
        %v603 = vld [vmem:[#allocation8 + $0x10] sm:$0xf]
        %v604 = vld [vmem:[#allocation8 + $0x14] sm:$0xf]
        %v605 = vld [vmem:[#allocation8 + $0x18] sm:$0xf]
        %v606 = vld [vmem:[#allocation8 + $0x1c] sm:$0xf]
        %v607 = vld [vmem:[#allocation8 + $0x20] sm:$0xf]
        %v608 = vld [vmem:[#allocation8 + $0x24] sm:$0xf]
        %v609 = vld [vmem:[#allocation8 + $0x28] sm:$0xf]
        %v610 = vld [vmem:[#allocation8 + $0x2c] sm:$0xf]
        %v611 = vld [vmem:[#allocation8 + $0x30] sm:$0xf]
        %v612 = vld [vmem:[#allocation8 + $0x34] sm:$0xf]
        %v613 = vld [vmem:[#allocation8 + $0x38] sm:$0xf]
        %v614 = vld [vmem:[#allocation8 + $0x3c] sm:$0xf]
        %v615 = vld [vmem:[%s6] sm:$0x1]
        %v616 = vpack.c.bf16 %v598, %v598
        %v618 = vperm.slane %v615, 0
        %v636 = vunpack.c.l.b16 %v599
        %v637 = vunpack.c.l.b16 %v600
        %v638 = vunpack.c.l.b16 %v601
        %v639 = vunpack.c.l.b16 %v602
        %v640 = vunpack.c.l.b16 %v603
        %v641 = vunpack.c.l.b16 %v604
        %v642 = vunpack.c.l.b16 %v605
        %v643 = vunpack.c.l.b16 %v606
        %v644 = vunpack.c.l.b16 %v607
        %v645 = vunpack.c.l.b16 %v608
        %v646 = vunpack.c.l.b16 %v609
        %v647 = vunpack.c.l.b16 %v610
        %v648 = vunpack.c.l.b16 %v611
        %v649 = vunpack.c.l.b16 %v612
        %v650 = vunpack.c.l.b16 %v613
        %v651 = vunpack.c.l.b16 %v614
        %v652 = vpack.c.b16 %v637, %v636
        %v653 = vpack.c.b16 %v639, %v638
        %v654 = vpack.c.b16 %v641, %v640
        %v655 = vpack.c.b16 %v643, %v642
        %v656 = vpack.c.b16 %v645, %v644
        %v657 = vpack.c.b16 %v647, %v646
        %v658 = vpack.c.b16 %v649, %v648
        %v659 = vpack.c.b16 %v651, %v650
        %668 = vmatpush.bf16.msra.mxu0 %v659
        %669 = vmatpush.bf16.msra.mxu0 %v658
        %670 = vmatpush.bf16.msra.mxu0 %v657
        %671 = vmatpush.bf16.msra.mxu0 %v656
        %672 = vmatpush.bf16.msra.mxu0 %v655
        %673 = vmatpush.bf16.msra.mxu0 %v654
        %674 = vmatpush.bf16.msra.mxu0 %v653
        %675 = vmatpush.bf16.msra.mxu0 %v652
        %676 = vmatmul.bf16.gmra.mxu0 %v616
        %v677 = vpop.f32.mrf.mxu0
        %v678 = vadd.f32 %v618, %v677
        %v679 = vpop.f32.mrf.mxu0
        %680 = vdwg.mxu0
        %681 = vst [vmem:[%s345] sm:$0xff] %v678
        %s682 = sand.u32 %s186, 1
        %s683 = scalar_lea.sflag [#allocation4], %s682
        %s684 = sand.u32 %s186, 1
        %s685 = smul.addr %s684, 8
        %s686 = scalar_lea.vmem [#allocation10], %s685
        // Predicated region
        $region65: #{tpu_custom_call.1} parent=47 // pred_check
          %p687 = pneg %p196
        $region66: #{tpu_custom_call.1} parent=47 // pred_check_branch
          %689 = sbr.rel (%p687) target = $region68
        $region67: #{tpu_custom_call.1} parent=47 // pred_region
          %691 = vsyncadd %s683, 0
          %s692 = smul.addr %s26, 8
          %s693 = scalar_lea.hbm %s7, %s692
          %s695 = sshll.u32 %s686, 4
          %s696 = int_to_ptr.vmem [resolvable:$true] %s695
          %s697 = sshll.u32 %s693, 4
          %s698 = int_to_ptr.hbm [resolvable:$true] %s697
          %700 = dma.vmem_to_hbm [thread:$0]  %s696, 128, %s698, %s683
        $region68: #{tpu_custom_call.1} parent=47 // pred_fallthru
          _
      $region48: #{tpu_custom_call.1} parent=5 // pred_fallthru
        _
      %p701 = scmp.le.s32.totalorder 2, %s21
      // Predicated region
      $region69: #{tpu_custom_call.1} parent=5 // pred_check
        %p702 = pneg %p701
      $region70: #{tpu_custom_call.1} parent=5 // pred_check_branch
        %704 = sbr.rel (%p702) target = $region72
      $region71: #{tpu_custom_call.1} parent=5 // pred_region
        %s705 = ssub.s32 %s21, 2
        // Predicated region
        $region73: #{tpu_custom_call.1} parent=71 // pred_check
          %p706 = pneg %p202
        $region74: #{tpu_custom_call.1} parent=71 // pred_check_branch
          %708 = sbr.rel (%p706) target = $region76
        $region75: #{tpu_custom_call.1} parent=71 // pred_region
          %s709 = sand.u32 %s187, 1
          %s710 = scalar_lea.sflag [#allocation4], %s709
          %s711 = sand.u32 %s187, 1
          %s712 = smul.addr %s711, 8
          %s713 = scalar_lea.vmem [#allocation10], %s712
          %715 = dma.done %s710, 128
        $region76: #{tpu_custom_call.1} parent=71 // pred_fallthru
          _
      $region72: #{tpu_custom_call.1} parent=5 // pred_fallthru
        _
    $region6: #{tpu_custom_call.1} parent=1 // loop_footer
      %s25 = sadd.s32 1, %s21
    $region7: #{tpu_custom_call.1} parent=1 // loop_footer_branch
      %20 = sbr.rel target = $region3
    $region8: #{tpu_custom_call.1} parent=1 // loop_exit
      _
    %716 = vsyncpa [#allocation3], 1
    %s717 = scalar_lea.sflag [#allocation3], 1
    %718 = vsyncpa %s717, 1
    %719 = vsyncpa [#allocation6], 1
    %720 = vsyncpa [#allocation9], 1
    %721 = vsyncpa [#allocation4], 1
    %s722 = scalar_lea.sflag [#allocation4], 1
    %723 = vsyncpa %s722, 1

</llo_original>
